<compile_context>
chip_gen: v6e
topology: v6e:2x2x1
jax: 0.10.0
libtpu: 0.0.40
codegen_flags: <defaults>
</compile_context>

<pallas_src>
import functools

import jax
import jax.numpy as jnp
from jax import lax
from jax.experimental import pallas as pl
from jax.experimental.pallas import tpu as pltpu


# ----------------------------------------------------------------------------
# Shared in-kernel helpers (operate on values, called from the kernel bodies)
# ----------------------------------------------------------------------------
def _qk_chunk_stats(x, y, wq, bq, wk, bk):
    """q/k projections for one HW chunk and their attention statistics."""
    # 1x1 convs == channel-mixing matmuls (bf16 operands, f32 accumulate)
    q = jnp.dot(wq, x, preferred_element_type=jnp.float32) + bq     # (C, chunk)
    k = jnp.dot(wk, y, preferred_element_type=jnp.float32) + bk     # (C, chunk)
    qb = q.astype(jnp.bfloat16)
    kb = k.astype(jnp.bfloat16)
    # raw gram over this chunk (contraction over lanes, MXU)
    gram = lax.dot_general(qb, kb, (((1,), (1,)), ((), ())),
                           preferred_element_type=jnp.float32)      # (C, C)
    # per-channel sum-of-squares (lane reduce, rides the XLU slot)
    ssq_q = jnp.sum(q * q, axis=-1, keepdims=True)                  # (C, 1)
    ssq_k = jnp.sum(k * k, axis=-1, keepdims=True)                  # (C, 1)
    return gram, ssq_q, ssq_k


def _col_to_row(col, c):
    """(C,1) -> (1,C) without a transpose op: diag-mask + sublane reduce."""
    ri = lax.broadcasted_iota(jnp.int32, (c, c), 0)
    ci = lax.broadcasted_iota(jnp.int32, (c, c), 1)
    diag = jnp.where(ri == ci, col, jnp.float32(0.0))
    return jnp.sum(diag, axis=0, keepdims=True)


def _finalize_weff(gram, ssq_q, ssq_k, wv, bv, wo, bo, temp, head,
                   *, c, pad_cols, bq, bk):
    """Normalize, softmax, and fold Wv / project_out into an effective 1x1 conv."""
    if pad_cols:
        # Zero-padded spatial columns contribute exactly the biases:
        #   q_pad = bq, k_pad = bk.  Subtract those contributions analytically.
        p = jnp.float32(pad_cols)
        bq_b = bq.astype(jnp.bfloat16)
        bk_b = bk.astype(jnp.bfloat16)
        gram = gram - p * lax.dot_general(bq_b, bk_b, (((1,), (1,)), ((), ())),
                                          preferred_element_type=jnp.float32)
        ssq_q = ssq_q - p * (bq * bq)
        ssq_k = ssq_k - p * (bk * bk)

    eps2 = jnp.float32(1e-24)   # == clamp ||.|| at 1e-12 (F.normalize eps)
    inv_q = lax.rsqrt(jnp.maximum(ssq_q, eps2))                      # (C, 1)
    inv_k_row = _col_to_row(lax.rsqrt(jnp.maximum(ssq_k, eps2)), c)  # (1, C)

    # logits[c,d] = <q_c,k_d> / (|q_c||k_d|) * temp[head(c)]; block-diag head mask
    logits = gram * (inv_q * temp) * inv_k_row
    same_head = head == _col_to_row(head, c)                         # (C, C) bool
    logits = jnp.where(same_head, logits, jnp.float32(-1e30))

    m = jnp.max(logits, axis=-1, keepdims=True)
    e = jnp.exp(logits - m)
    # NOTE: approx reciprocal -> rows sum to 1 within ~2^-12 relative error.
    attn = e * pl.reciprocal(jnp.sum(e, axis=-1, keepdims=True), approx=True)

    # out = Wo @ (attn @ (Wv @ y + bv)) + bo  ==  W_eff @ y + b_eff
    woa = jnp.dot(wo, attn.astype(jnp.bfloat16),
                  preferred_element_type=jnp.float32)                # (C, C) f32
    weff = jnp.dot(woa.astype(jnp.bfloat16), wv,
                   preferred_element_type=jnp.float32)               # (C, C) f32
    beff = jnp.dot(woa, bv, preferred_element_type=jnp.float32) + bo # (C, 1) f32
    return weff, beff


# ----------------------------------------------------------------------------
# Kernel A: streamed attention statistics -> per-batch effective 1x1 conv
# ----------------------------------------------------------------------------
def _attn_weff_kernel(x_ref, y_ref, w_ref, b_ref, aux_ref,
                      weff_ref, beff_ref,
                      gram_acc, ssqq_acc, ssqk_acc,
                      *, c, pad_cols):
    t = pl.program_id(1)
    nt = pl.num_programs(1)

    @pl.when(t == 0)
    def _init():
        gram_acc[...] = jnp.zeros_like(gram_acc)
        ssqq_acc[...] = jnp.zeros_like(ssqq_acc)
        ssqk_acc[...] = jnp.zeros_like(ssqk_acc)

    wq = w_ref[pl.ds(0, c), :]
    wk = w_ref[pl.ds(c, c), :]
    bq = b_ref[pl.ds(0, c), :]
    bk = b_ref[pl.ds(c, c), :]

    gram, ssq_q, ssq_k = _qk_chunk_stats(x_ref[...], y_ref[...], wq, bq, wk, bk)
    gram_acc[...] += gram
    ssqq_acc[...] += ssq_q
    ssqk_acc[...] += ssq_k

    @pl.when(t == nt - 1)
    def _finalize():
        wv = w_ref[pl.ds(2 * c, c), :]
        wo = w_ref[pl.ds(3 * c, c), :]
        bv = b_ref[pl.ds(2 * c, c), :]
        bo = b_ref[pl.ds(3 * c, c), :]
        temp = aux_ref[:, pl.ds(0, 1)]
        head = aux_ref[:, pl.ds(1, 1)]
        weff, beff = _finalize_weff(
            gram_acc[...], ssqq_acc[...], ssqk_acc[...],
            wv, bv, wo, bo, temp, head,
            c=c, pad_cols=pad_cols, bq=bq, bk=bk)
        weff_ref[...] = weff.astype(weff_ref.dtype)
        beff_ref[...] = beff.astype(beff_ref.dtype)


# ----------------------------------------------------------------------------
# Fused single-chunk kernel (n_chunks == 1): stats + finalize + apply in one pass
# ----------------------------------------------------------------------------
def _attn_fused_kernel(x_ref, y_ref, w_ref, b_ref, aux_ref, o_ref,
                       *, c, pad_cols):
    wq = w_ref[pl.ds(0, c), :]
    wk = w_ref[pl.ds(c, c), :]
    wv = w_ref[pl.ds(2 * c, c), :]
    wo = w_ref[pl.ds(3 * c, c), :]
    bq = b_ref[pl.ds(0, c), :]
    bk = b_ref[pl.ds(c, c), :]
    bv = b_ref[pl.ds(2 * c, c), :]
    bo = b_ref[pl.ds(3 * c, c), :]

    y = y_ref[...]
    gram, ssq_q, ssq_k = _qk_chunk_stats(x_ref[...], y, wq, bq, wk, bk)
    temp = aux_ref[:, pl.ds(0, 1)]
    head = aux_ref[:, pl.ds(1, 1)]
    weff, beff = _finalize_weff(gram, ssq_q, ssq_k, wv, bv, wo, bo, temp, head,
                                c=c, pad_cols=pad_cols, bq=bq, bk=bk)
    out = jnp.dot(weff.astype(jnp.bfloat16), y,
                  preferred_element_type=jnp.float32) + beff
    o_ref[...] = out.astype(o_ref.dtype)


# ----------------------------------------------------------------------------
# Kernel B: apply the effective 1x1 conv, streamed over (possibly larger) chunks
# ----------------------------------------------------------------------------
def _apply_kernel(weff_ref, beff_ref, y_ref, o_ref):
    out = jnp.dot(weff_ref[...], y_ref[...],
                  preferred_element_type=jnp.float32) + beff_ref[...]
    o_ref[...] = out.astype(o_ref.dtype)


# ----------------------------------------------------------------------------
# Wrapper
# ----------------------------------------------------------------------------
def mutual_attention_pallas(x, y, params, num_heads, *,
                            max_chunk=8192, out_dtype=None,
                            vmem_budget_bytes=32 * 1024 * 1024):
    """x, y: (b, c, h, w) NCHW. Returns (b, c, h, w)."""
    b, c, h, w = x.shape
    assert y.shape == x.shape
    assert c % num_heads == 0
    ch = c // num_heads
    hw = h * w
    out_dtype = x.dtype if out_dtype is None else jnp.dtype(out_dtype)

    (wq, bq, wk, bk, wv, bv, wo, bo, temp) = params

    # ---- chunk selection: lane-dense (multiple of 128), VMEM-budgeted ------
    hw128 = -(-hw // 128) * 128
    max_chunk = max(128, (max_chunk // 128) * 128)

    def _cap(bytes_per_col):       # biggest lane-dense chunk under the budget
        return max(256, (vmem_budget_bytes // bytes_per_col) // 128 * 128)

    cap_a = _cap(32 * c)   # stats kernel: x,y (2-buf bf16) + q,k f32 temps
    cap_b = _cap(20 * c)   # apply kernel: y (2-buf bf16) + f32 out (2-buf) + tmp
    cap_f = _cap(44 * c)   # fused kernel: both of the above resident
    vmem_limit = 48 * 1024 * 1024   # > default scoped limit, < v7x 64 MiB phys

    fused = hw128 <= min(max_chunk, cap_f)
    if fused:
        chunk_a = hw128
        n_chunks_a = 1
        hw_padded = hw128
    else:
        chunk_max = min(max_chunk, cap_a)
        n_chunks_a = -(-hw128 // chunk_max)
        chunk_a = -(-hw128 // (n_chunks_a * 128)) * 128   # rebalance -> less padding
        hw_padded = n_chunks_a * chunk_a
        # Kernel B tolerates a larger chunk (smaller per-column footprint).
        chunk_b = chunk_a
        while hw_padded % (chunk_b * 2) == 0 and chunk_b * 2 <= cap_b:
            chunk_b *= 2
        n_chunks_b = hw_padded // chunk_b
    pad_cols = hw_padded - hw

    # ---- operand packing -----------------------------------------------------
    x2 = x.reshape(b, c, hw)
    y2 = y.reshape(b, c, hw)
    if pad_cols:
        x2 = jnp.pad(x2, ((0, 0), (0, 0), (0, pad_cols)))
        y2 = jnp.pad(y2, ((0, 0), (0, 0), (0, pad_cols)))
    xb = x2.astype(jnp.bfloat16)
    yb = y2.astype(jnp.bfloat16)

    w_pack = jnp.concatenate([wq, wk, wv, wo], axis=0).astype(jnp.bfloat16)  # (4C,C)
    b_pack = jnp.concatenate([bq, bk, bv, bo], axis=0).astype(jnp.float32)   # (4C,1)
    temp_row = jnp.repeat(temp.reshape(num_heads).astype(jnp.float32), ch)
    head_row = jnp.repeat(jnp.arange(num_heads, dtype=jnp.float32), ch)
    aux = jnp.stack([temp_row, head_row], axis=1)                            # (C, 2)

    if fused:
        chunk_spec = pl.BlockSpec((None, c, chunk_a), lambda i: (i, 0, 0))
        out = pl.pallas_call(
            functools.partial(_attn_fused_kernel, c=c, pad_cols=pad_cols),
            grid=(b,),
            in_specs=[chunk_spec, chunk_spec,
                      pl.BlockSpec((4 * c, c), lambda i: (0, 0)),
                      pl.BlockSpec((4 * c, 1), lambda i: (0, 0)),
                      pl.BlockSpec((c, 2), lambda i: (0, 0))],
            out_specs=chunk_spec,
            out_shape=jax.ShapeDtypeStruct((b, c, hw_padded), out_dtype),
            compiler_params=pltpu.CompilerParams(
                dimension_semantics=("parallel",),
                vmem_limit_bytes=vmem_limit),
        )(xb, yb, w_pack, b_pack, aux)
    else:
        # ---- Kernel A: attention statistics -> (W_eff, b_eff) per batch ----
        chunk_spec_a = pl.BlockSpec((None, c, chunk_a), lambda i, t: (i, 0, t))
        weff, beff = pl.pallas_call(
            functools.partial(_attn_weff_kernel, c=c, pad_cols=pad_cols),
            grid=(b, n_chunks_a),
            in_specs=[chunk_spec_a, chunk_spec_a,
                      pl.BlockSpec((4 * c, c), lambda i, t: (0, 0)),
                      pl.BlockSpec((4 * c, 1), lambda i, t: (0, 0)),
                      pl.BlockSpec((c, 2), lambda i, t: (0, 0))],
            out_specs=(pl.BlockSpec((None, c, c), lambda i, t: (i, 0, 0)),
                       pl.BlockSpec((None, c, 1), lambda i, t: (i, 0, 0))),
            out_shape=(jax.ShapeDtypeStruct((b, c, c), jnp.bfloat16),
                       jax.ShapeDtypeStruct((b, c, 1), jnp.float32)),
            scratch_shapes=[pltpu.VMEM((c, c), jnp.float32),   # gram accumulator
                            pltpu.VMEM((c, 1), jnp.float32),   # sum(q^2)
                            pltpu.VMEM((c, 1), jnp.float32)],  # sum(k^2)
            compiler_params=pltpu.CompilerParams(
                dimension_semantics=("parallel", "arbitrary"),
                vmem_limit_bytes=vmem_limit),
        )(xb, yb, w_pack, b_pack, aux)

        # ---- Kernel B: out = W_eff @ y + b_eff, fully parallel over chunks ----
        chunk_spec_b = pl.BlockSpec((None, c, chunk_b), lambda i, t: (i, 0, t))
        out = pl.pallas_call(
            _apply_kernel,
            grid=(b, n_chunks_b),
            in_specs=[pl.BlockSpec((None, c, c), lambda i, t: (i, 0, 0)),
                      pl.BlockSpec((None, c, 1), lambda i, t: (i, 0, 0)),
                      chunk_spec_b],
            out_specs=chunk_spec_b,
            out_shape=jax.ShapeDtypeStruct((b, c, hw_padded), out_dtype),
            compiler_params=pltpu.CompilerParams(
                dimension_semantics=("parallel", "parallel"),
                vmem_limit_bytes=vmem_limit),
        )(weff, beff, yb)

    if pad_cols:
        out = out[:, :, :hw]
    return out.reshape(b, c, h, w)


# ----------------------------------------------------------------------------
# Plain-JAX reference mirroring the PyTorch forward
# ----------------------------------------------------------------------------
def mutual_attention_ref(x, y, params, num_heads):
    (wq, bq, wk, bk, wv, bv, wo, bo, temp) = params
    b, c, h, w = x.shape
    hw = h * w
    ch = c // num_heads

    def conv1x1(inp, w_, b_):
        return jnp.einsum('oc,bcp->bop', w_, inp.reshape(b, c, hw)) + b_[None, :, :]

    q = conv1x1(x, wq, bq).reshape(b, num_heads, ch, hw)
    k = conv1x1(y, wk, bk).reshape(b, num_heads, ch, hw)
    v = conv1x1(y, wv, bv).reshape(b, num_heads, ch, hw)

    eps = 1e-12
    q = q / jnp.maximum(jnp.linalg.norm(q, axis=-1, keepdims=True), eps)
    k = k / jnp.maximum(jnp.linalg.norm(k, axis=-1, keepdims=True), eps)

    attn = jnp.einsum('bhcp,bhdp->bhcd', q, k) * temp[None, :, :, None]
    attn = jax.nn.softmax(attn, axis=-1)
    out = jnp.einsum('bhcd,bhdp->bhcp', attn, v).reshape(b, c, hw)
    out = jnp.einsum('oc,bcp->bop', wo, out) + bo[None, :, :]
    return out.reshape(b, c, h, w)


def init_params(key, dim, num_heads, bias=True):
    ks = jax.random.split(key, 8)
    scale = 1.0 / jnp.sqrt(dim)

    def conv_w(k):
        return jax.random.uniform(k, (dim, dim), jnp.float32, -1.0, 1.0) * scale

    def conv_b(k):
        if bias:
            return jax.random.uniform(k, (dim, 1), jnp.float32, -1.0, 1.0) * scale
        return jnp.zeros((dim, 1), jnp.float32)

    wq, wk, wv, wo = conv_w(ks[0]), conv_w(ks[1]), conv_w(ks[2]), conv_w(ks[3])
    bq, bk, bv, bo = conv_b(ks[4]), conv_b(ks[5]), conv_b(ks[6]), conv_b(ks[7])
    temp = jnp.ones((num_heads, 1), jnp.float32)   # torch.ones(num_heads, 1, 1)
    return (wq, bq, wk, bk, wv, bv, wo, bo, temp)


if __name__ == "__main__":
    B, DIM, NUM_HEADS = 2, 32, 4
    key = jax.random.PRNGKey(0)
    kx, ky, kp = jax.random.split(key, 3)
    params = init_params(kp, DIM, NUM_HEADS, bias=True)

    # Config 1: 16x16 -> hw=256 -> single chunk -> fused one-pass kernel.
    x = jax.random.normal(kx, (B, DIM, 16, 16), jnp.float32)
    y = jax.random.normal(ky, (B, DIM, 16, 16), jnp.float32)
    out = jax.block_until_ready(mutual_attention_pallas(x, y, params, NUM_HEADS))
    ref = mutual_attention_ref(x, y, params, NUM_HEADS)
    assert out.shape == x.shape
    err = float(jnp.max(jnp.abs(out - ref)))
    assert jnp.allclose(out, ref, atol=5e-2, rtol=5e-2), err

    # Config 2: 12x12 -> hw=144, fused path with zero-padded columns
    #           (exercises the analytic bias correction).
    x2 = jax.random.normal(kx, (B, DIM, 12, 12), jnp.float32)
    y2 = jax.random.normal(ky, (B, DIM, 12, 12), jnp.float32)
    out2 = jax.block_until_ready(mutual_attention_pallas(x2, y2, params, NUM_HEADS))
    ref2 = mutual_attention_ref(x2, y2, params, NUM_HEADS)
    err2 = float(jnp.max(jnp.abs(out2 - ref2)))
    assert jnp.allclose(out2, ref2, atol=5e-2, rtol=5e-2), err2

    # Config 3: force the streamed two-kernel path (2 chunks of 128 + padding,
    #           Kernel B automatically picks a wider 256-lane chunk).
    out3 = jax.block_until_ready(
        mutual_attention_pallas(x2, y2, params, NUM_HEADS, max_chunk=128))
    err3 = float(jnp.max(jnp.abs(out3 - ref2)))
    assert jnp.allclose(out3, ref2, atol=5e-2, rtol=5e-2), err3

    print("KERNEL_OK")
</pallas_src>

<mosaic_0001>
module attributes {stable_mosaic.version = 11 : i64} {
  func.func @_attn_fused_kernel(%arg0: i32, %arg1: memref<1x32x256xbf16, #tpu.memory_space<vmem>>, %arg2: memref<1x32x256xbf16, #tpu.memory_space<vmem>>, %arg3: memref<128x32xbf16, #tpu.memory_space<vmem>>, %arg4: memref<128x1xf32, #tpu.memory_space<vmem>>, %arg5: memref<32x2xf32, #tpu.memory_space<vmem>>, %arg6: memref<1x32x256xf32, #tpu.memory_space<vmem>>) attributes {dimension_semantics = [#tpu.dimension_semantics<parallel>], iteration_bounds = array<i64: 2>, scalar_prefetch = 0 : i64, scratch_operands = 0 : i64, tpu.core_type = #tpu.core_type<tc>, window_params = [{transform_indices = @transform_0, window_bounds = array<i64: 1, 32, 256>}, {transform_indices = @transform_1, window_bounds = array<i64: 1, 32, 256>}, {pipeline_mode = #tpu.pipeline_mode<synchronous>, transform_indices = @transform_2, window_bounds = array<i64: 128, 32>}, {pipeline_mode = #tpu.pipeline_mode<synchronous>, transform_indices = @transform_3, window_bounds = array<i64: 128, 1>}, {pipeline_mode = #tpu.pipeline_mode<synchronous>, transform_indices = @transform_4, window_bounds = array<i64: 32, 2>}, {transform_indices = @transform_5, window_bounds = array<i64: 1, 32, 256>}]} {
    %c0 = arith.constant 0 : index
    %c0_0 = arith.constant 0 : index
    %0 = vector.load %arg3[%c0, %c0_0] : memref<128x32xbf16, #tpu.memory_space<vmem>>, vector<32x32xbf16>
    %c32 = arith.constant 32 : index
    %c0_1 = arith.constant 0 : index
    %1 = vector.load %arg3[%c32, %c0_1] : memref<128x32xbf16, #tpu.memory_space<vmem>>, vector<32x32xbf16>
    %c64 = arith.constant 64 : index
    %c0_2 = arith.constant 0 : index
    %2 = vector.load %arg3[%c64, %c0_2] : memref<128x32xbf16, #tpu.memory_space<vmem>>, vector<32x32xbf16>
    %c96 = arith.constant 96 : index
    %c0_3 = arith.constant 0 : index
    %3 = vector.load %arg3[%c96, %c0_3] : memref<128x32xbf16, #tpu.memory_space<vmem>>, vector<32x32xbf16>
    %c0_4 = arith.constant 0 : index
    %c0_5 = arith.constant 0 : index
    %4 = vector.load %arg4[%c0_4, %c0_5] : memref<128x1xf32, #tpu.memory_space<vmem>>, vector<32x1xf32>
    %c32_6 = arith.constant 32 : index
    %c0_7 = arith.constant 0 : index
    %5 = vector.load %arg4[%c32_6, %c0_7] : memref<128x1xf32, #tpu.memory_space<vmem>>, vector<32x1xf32>
    %c64_8 = arith.constant 64 : index
    %c0_9 = arith.constant 0 : index
    %6 = vector.load %arg4[%c64_8, %c0_9] : memref<128x1xf32, #tpu.memory_space<vmem>>, vector<32x1xf32>
    %c96_10 = arith.constant 96 : index
    %c0_11 = arith.constant 0 : index
    %7 = vector.load %arg4[%c96_10, %c0_11] : memref<128x1xf32, #tpu.memory_space<vmem>>, vector<32x1xf32>
    %c0_12 = arith.constant 0 : index
    %c0_13 = arith.constant 0 : index
    %c0_14 = arith.constant 0 : index
    %8 = vector.load %arg2[%c0_12, %c0_13, %c0_14] : memref<1x32x256xbf16, #tpu.memory_space<vmem>>, vector<1x32x256xbf16>
    %9 = vector.shape_cast %8 : vector<1x32x256xbf16> to vector<32x256xbf16>
    %c0_15 = arith.constant 0 : index
    %c0_16 = arith.constant 0 : index
    %c0_17 = arith.constant 0 : index
    %10 = vector.load %arg1[%c0_15, %c0_16, %c0_17] : memref<1x32x256xbf16, #tpu.memory_space<vmem>>, vector<1x32x256xbf16>
    %11 = vector.shape_cast %10 : vector<1x32x256xbf16> to vector<32x256xbf16>
    %cst = arith.constant dense<0.000000e+00> : vector<32x256xf32>
    %12 = tpu.matmul %0, %11, %cst {dimension_numbers = #tpu.dot_dimension_numbers<[1], [0], [0], [1], [0, 0, 1, 1], [], []>} : vector<32x32xbf16>, vector<32x256xbf16>, vector<32x256xf32> -> vector<32x256xf32>
    %13 = vector.broadcast %4 : vector<32x1xf32> to vector<32x256xf32>
    %14 = arith.addf %12, %13 : vector<32x256xf32>
    %cst_18 = arith.constant dense<0.000000e+00> : vector<32x256xf32>
    %15 = tpu.matmul %1, %9, %cst_18 {dimension_numbers = #tpu.dot_dimension_numbers<[1], [0], [0], [1], [0, 0, 1, 1], [], []>} : vector<32x32xbf16>, vector<32x256xbf16>, vector<32x256xf32> -> vector<32x256xf32>
    %16 = vector.broadcast %5 : vector<32x1xf32> to vector<32x256xf32>
    %17 = arith.addf %15, %16 : vector<32x256xf32>
    %18 = arith.truncf %14 : vector<32x256xf32> to vector<32x256xbf16>
    %19 = arith.truncf %17 : vector<32x256xf32> to vector<32x256xbf16>
    %cst_19 = arith.constant dense<0.000000e+00> : vector<32x32xf32>
    %20 = tpu.matmul %18, %19, %cst_19 {dimension_numbers = #tpu.dot_dimension_numbers<[1], [1], [0], [0], [0, 0, 1, 0], [], []>} : vector<32x256xbf16>, vector<32x256xbf16>, vector<32x32xf32> -> vector<32x32xf32>
    %21 = arith.mulf %14, %14 : vector<32x256xf32>
    %cst_20 = arith.constant dense<0.000000e+00> : vector<32xf32>
    %22 = vector.multi_reduction <add>, %21, %cst_20 [1] : vector<32x256xf32> to vector<32xf32>
    %23 = vector.shape_cast %22 : vector<32xf32> to vector<32x1xf32>
    %24 = arith.mulf %17, %17 : vector<32x256xf32>
    %cst_21 = arith.constant dense<0.000000e+00> : vector<32xf32>
    %25 = vector.multi_reduction <add>, %24, %cst_21 [1] : vector<32x256xf32> to vector<32xf32>
    %26 = vector.shape_cast %25 : vector<32xf32> to vector<32x1xf32>
    %c0_22 = arith.constant 0 : index
    %c0_23 = arith.constant 0 : index
    %27 = vector.load %arg5[%c0_22, %c0_23] : memref<32x2xf32, #tpu.memory_space<vmem>>, vector<32x1xf32>
    %c0_24 = arith.constant 0 : index
    %c1 = arith.constant 1 : index
    %28 = vector.load %arg5[%c0_24, %c1] : memref<32x2xf32, #tpu.memory_space<vmem>>, vector<32x1xf32>
    %cst_25 = arith.constant 1.000000e-24 : f32
    %29 = vector.broadcast %cst_25 : f32 to vector<32x1xf32>
    %30 = arith.maximumf %23, %29 : vector<32x1xf32>
    %31 = math.rsqrt %30 : vector<32x1xf32>
    %cst_26 = arith.constant 1.000000e-24 : f32
    %32 = vector.broadcast %cst_26 : f32 to vector<32x1xf32>
    %33 = arith.maximumf %26, %32 : vector<32x1xf32>
    %34 = math.rsqrt %33 : vector<32x1xf32>
    %35 = tpu.iota {dimensions = array<i32: 0>} : vector<32x32xi32>
    %36 = tpu.iota {dimensions = array<i32: 1>} : vector<32x32xi32>
    %37 = arith.cmpi eq, %35, %36 : vector<32x32xi32>
    %cst_27 = arith.constant 0.000000e+00 : f32
    %38 = vector.shape_cast %34 : vector<32x1xf32> to vector<32x1xf32>
    %39 = vector.broadcast %38 : vector<32x1xf32> to vector<32x32xf32>
    %40 = vector.broadcast %cst_27 : f32 to vector<32x32xf32>
    %41 = arith.select %37, %39, %40 : vector<32x32xi1>, vector<32x32xf32>
    %cst_28 = arith.constant dense<0.000000e+00> : vector<32xf32>
    %42 = vector.multi_reduction <add>, %41, %cst_28 [0] : vector<32x32xf32> to vector<32xf32>
    %43 = vector.shape_cast %42 : vector<32xf32> to vector<1x32xf32>
    %44 = arith.mulf %31, %27 : vector<32x1xf32>
    %45 = vector.broadcast %44 : vector<32x1xf32> to vector<32x32xf32>
    %46 = arith.mulf %20, %45 : vector<32x32xf32>
    %47 = vector.broadcast %43 : vector<1x32xf32> to vector<32x32xf32>
    %48 = arith.mulf %46, %47 : vector<32x32xf32>
    %49 = tpu.iota {dimensions = array<i32: 0>} : vector<32x32xi32>
    %50 = tpu.iota {dimensions = array<i32: 1>} : vector<32x32xi32>
    %51 = arith.cmpi eq, %49, %50 : vector<32x32xi32>
    %cst_29 = arith.constant 0.000000e+00 : f32
    %52 = vector.shape_cast %28 : vector<32x1xf32> to vector<32x1xf32>
    %53 = vector.broadcast %52 : vector<32x1xf32> to vector<32x32xf32>
    %54 = vector.broadcast %cst_29 : f32 to vector<32x32xf32>
    %55 = arith.select %51, %53, %54 : vector<32x32xi1>, vector<32x32xf32>
    %cst_30 = arith.constant dense<0.000000e+00> : vector<32xf32>
    %56 = vector.multi_reduction <add>, %55, %cst_30 [0] : vector<32x32xf32> to vector<32xf32>
    %57 = vector.shape_cast %56 : vector<32xf32> to vector<1x32xf32>
    %58 = vector.broadcast %28 : vector<32x1xf32> to vector<32x32xf32>
    %59 = vector.broadcast %57 : vector<1x32xf32> to vector<32x32xf32>
    %60 = arith.cmpf oeq, %58, %59 : vector<32x32xf32>
    %cst_31 = arith.constant -1.000000e+30 : f32
    %61 = vector.broadcast %cst_31 : f32 to vector<32x32xf32>
    %62 = arith.select %60, %48, %61 : vector<32x32xi1>, vector<32x32xf32>
    %cst_32 = arith.constant dense<0xFF800000> : vector<32xf32>
    %63 = vector.multi_reduction <maximumf>, %62, %cst_32 [1] : vector<32x32xf32> to vector<32xf32>
    %64 = vector.shape_cast %63 : vector<32xf32> to vector<32x1xf32>
    %65 = vector.broadcast %64 : vector<32x1xf32> to vector<32x32xf32>
    %66 = arith.subf %62, %65 : vector<32x32xf32>
    %67 = math.exp %66 : vector<32x32xf32>
    %cst_33 = arith.constant dense<0.000000e+00> : vector<32xf32>
    %68 = vector.multi_reduction <add>, %67, %cst_33 [1] : vector<32x32xf32> to vector<32xf32>
    %69 = vector.shape_cast %68 : vector<32xf32> to vector<32x1xf32>
    %70 = tpu.reciprocal %69 {approx = true} : vector<32x1xf32> -> vector<32x1xf32>
    %71 = vector.broadcast %70 : vector<32x1xf32> to vector<32x32xf32>
    %72 = arith.mulf %67, %71 : vector<32x32xf32>
    %73 = arith.truncf %72 : vector<32x32xf32> to vector<32x32xbf16>
    %cst_34 = arith.constant dense<0.000000e+00> : vector<32x32xf32>
    %74 = tpu.matmul %3, %73, %cst_34 {dimension_numbers = #tpu.dot_dimension_numbers<[1], [0], [0], [1], [0, 0, 1, 1], [], []>} : vector<32x32xbf16>, vector<32x32xbf16>, vector<32x32xf32> -> vector<32x32xf32>
    %75 = arith.truncf %74 : vector<32x32xf32> to vector<32x32xbf16>
    %cst_35 = arith.constant dense<0.000000e+00> : vector<32x32xf32>
    %76 = tpu.matmul %75, %2, %cst_35 {dimension_numbers = #tpu.dot_dimension_numbers<[1], [0], [0], [1], [0, 0, 1, 1], [], []>} : vector<32x32xbf16>, vector<32x32xbf16>, vector<32x32xf32> -> vector<32x32xf32>
    %cst_36 = arith.constant dense<0.000000e+00> : vector<32x1xf32>
    %77 = tpu.matmul %74, %6, %cst_36 {dimension_numbers = #tpu.dot_dimension_numbers<[1], [0], [0], [1], [0, 0, 1, 1], [], []>} : vector<32x32xf32>, vector<32x1xf32>, vector<32x1xf32> -> vector<32x1xf32>
    %78 = arith.addf %77, %7 : vector<32x1xf32>
    %79 = arith.truncf %76 : vector<32x32xf32> to vector<32x32xbf16>
    %cst_37 = arith.constant dense<0.000000e+00> : vector<32x256xf32>
    %80 = tpu.matmul %79, %9, %cst_37 {dimension_numbers = #tpu.dot_dimension_numbers<[1], [0], [0], [1], [0, 0, 1, 1], [], []>} : vector<32x32xbf16>, vector<32x256xbf16>, vector<32x256xf32> -> vector<32x256xf32>
    %81 = vector.broadcast %78 : vector<32x1xf32> to vector<32x256xf32>
    %82 = arith.addf %80, %81 : vector<32x256xf32>
    %c0_38 = arith.constant 0 : index
    %c0_39 = arith.constant 0 : index
    %c0_40 = arith.constant 0 : index
    %83 = vector.load %arg6[%c0_38, %c0_39, %c0_40] : memref<1x32x256xf32, #tpu.memory_space<vmem>>, vector<1x32x256xf32>
    %84 = vector.shape_cast %83 : vector<1x32x256xf32> to vector<32x256xf32>
    %85 = vector.shape_cast %82 : vector<32x256xf32> to vector<1x32x256xf32>
    tpu.vector_store %arg6[%c0_38, %c0_39, %c0_40], %85 {strides = array<i32>} : memref<1x32x256xf32, #tpu.memory_space<vmem>>, vector<1x32x256xf32>,
    return
  }
  func.func @transform_0(%arg0: i32) -> (i32, i32, i32) {
    %c0_i32 = arith.constant 0 : i32
    %c0_i32_0 = arith.constant 0 : i32
    %c0_i32_1 = arith.constant 0 : i32
    return %arg0, %c0_i32, %c0_i32_0 : i32, i32, i32
  }
  func.func @transform_1(%arg0: i32) -> (i32, i32, i32) {
    %c0_i32 = arith.constant 0 : i32
    %c0_i32_0 = arith.constant 0 : i32
    %c0_i32_1 = arith.constant 0 : i32
    return %arg0, %c0_i32, %c0_i32_0 : i32, i32, i32
  }
  func.func @transform_2(%arg0: i32) -> (i32, i32) {
    %c0_i32 = arith.constant 0 : i32
    %c0_i32_0 = arith.constant 0 : i32
    %c0_i32_1 = arith.constant 0 : i32
    return %c0_i32, %c0_i32_0 : i32, i32
  }
  func.func @transform_3(%arg0: i32) -> (i32, i32) {
    %c0_i32 = arith.constant 0 : i32
    %c0_i32_0 = arith.constant 0 : i32
    %c0_i32_1 = arith.constant 0 : i32
    return %c0_i32, %c0_i32_0 : i32, i32
  }
  func.func @transform_4(%arg0: i32) -> (i32, i32) {
    %c0_i32 = arith.constant 0 : i32
    %c0_i32_0 = arith.constant 0 : i32
    %c0_i32_1 = arith.constant 0 : i32
    return %c0_i32, %c0_i32_0 : i32, i32
  }
  func.func @transform_5(%arg0: i32) -> (i32, i32, i32) {
    %c0_i32 = arith.constant 0 : i32
    %c0_i32_0 = arith.constant 0 : i32
    %c0_i32_1 = arith.constant 0 : i32
    return %arg0, %c0_i32, %c0_i32_0 : i32, i32, i32
  }
}

</mosaic_0001>

<llo_original>
// kernel: tpu_custom_call.1
$region0: #{tpu_custom_call.1}
  #allocation0 [shape = 'u32[]', space=smem, size = 0x4, offset = 0x4, fixed_abs, tag = 'smem constant byte address 0x4 - core index']
  #allocation1 [shape = 'u32[144,128]{1,0:T(1,128)}', space=vmem, size = 0x12000, scoped, tag = 'internal scratch']
  %s0 = inlined_call_operand.vmem [shape: bf16[2,32,256], index: 0, kind: input, shape index: {}]
  %s1 = inlined_call_operand.vmem [shape: bf16[2,32,256], index: 1, kind: input, shape index: {}]
  %s2 = inlined_call_operand.vmem [shape: bf16[128,32], index: 2, kind: input, shape index: {}]
  %s3 = inlined_call_operand.vmem [shape: f32[128,1], index: 3, kind: input, shape index: {}]
  %s4 = inlined_call_operand.vmem [shape: f32[32,2], index: 4, kind: input, shape index: {}]
  %s5 = inlined_call_operand.hbm [shape: f32[2,32,256], index: 5, kind: output, shape index: {}]
  %s6 = sld [smem:[#allocation0]]
  $region53: #{tpu_custom_call.1} parent=0
    _
  %s8 = ssub.s32 1, %s6
  %s9 = scalar_select 0, %s8, %s6
  $region1: #{tpu_custom_call.1} parent=0
    #allocation2 [shape = 'u8[65536]{0}', space=vmem, size = 0x10000, scoped, tag = 'output window, operand 0']
    #allocation3 [shape = 's32[2]{0}', space=sflag, size = 0x8, scoped, tag = 'scoped memory for tpu_custom_call.1']
    %10 = vsyncpa [#allocation3], 0
    %s11 = scalar_lea.sflag [#allocation3], 1
    %12 = vsyncpa %s11, 0
    loop: start=0, step=1, limit=4
    $region2: #{tpu_custom_call.1} parent=1 // loop_pre_header
      _
    $region3: #{tpu_custom_call.1} parent=1 // loop_header
      %s14 = sphi 0, %s18
      %p15 = scmp.ge.s32.totalorder %s14, 4
      %s24 = sphi 0, %s26
      %s27 = sphi 0, %s24
      %s28 = sphi 0, %s27
      %s44 = sphi 0, %s28
      %s50 = sphi 0, %s52
      %s53 = sphi 0, %s50
      %s54 = sphi 0, %s53
      %s70 = sphi 0, %s54
      %s74 = sphi 0, %s74
      %s76 = sphi 0, %s74
      %s77 = sphi 0, %s76
      %s91 = sphi 0, %s77
      %s95 = sphi 0, %s95
      %s97 = sphi 0, %s95
      %s98 = sphi 0, %s97
      %s112 = sphi 0, %s98
      %s116 = sphi 0, %s116
      %s118 = sphi 0, %s116
      %s119 = sphi 0, %s118
      %s133 = sphi 0, %s119
      %s139 = sphi 0, %s141
      %s142 = sphi 0, %s139
      %s143 = sphi 0, %s142
      %s159 = sphi 0, %s143
    $region4: #{tpu_custom_call.1} parent=1 // loop_header_branch
      %17 = sbr.rel (%p15) target = $region8
    $region5: #{tpu_custom_call.1} parent=1 // loop_body
      %s19 = ssub.s32 %s14, 1
      %s20 = ssub.s32 %s14, 2
      %s21 = sadd.s32 %s14, 1
      %s22 = ssub.s32 %s14, %s21
      %p23 = scmp.eq.s32.totalorder %s22, 0
      %s25 = sadd.s32 %s24, 1
      %s26 = scalar_select %p23, %s24, %s25
      %p29 = pneg %p23
      %p30 = scmp.eq.s32.totalorder %s14, 1
      %p31 = por %p29, %p30
      %p32 = scmp.ne.s32.totalorder %s24, %s27
      %p33 = scmp.eq.s32.totalorder %s14, 0
      %p34 = por %p32, %p33
      %p35 = scmp.ne.s32.totalorder %s24, %s27
      %p36 = scmp.eq.s32.totalorder %s19, 1
      %p37 = por %p35, %p36
      %p38 = scmp.ne.s32.totalorder %s27, %s28
      %p39 = scmp.eq.s32.totalorder %s19, 0
      %p40 = por %p38, %p39
      %p41 = scmp.ne.s32.totalorder %s27, %s28
      %p42 = scmp.eq.s32.totalorder %s20, 1
      %p43 = por %p41, %p42
      %p45 = scmp.ne.s32.totalorder %s28, %s44
      %p46 = scmp.eq.s32.totalorder %s20, 0
      %p47 = por %p45, %p46
      %s48 = ssub.s32 %s14, %s21
      %p49 = scmp.eq.s32.totalorder %s48, 0
      %s51 = sadd.s32 %s50, 1
      %s52 = scalar_select %p49, %s50, %s51
      %p55 = pneg %p49
      %p56 = scmp.eq.s32.totalorder %s14, 1
      %p57 = por %p55, %p56
      %p58 = scmp.ne.s32.totalorder %s50, %s53
      %p59 = scmp.eq.s32.totalorder %s14, 0
      %p60 = por %p58, %p59
      %p61 = scmp.ne.s32.totalorder %s50, %s53
      %p62 = scmp.eq.s32.totalorder %s19, 1
      %p63 = por %p61, %p62
      %p64 = scmp.ne.s32.totalorder %s53, %s54
      %p65 = scmp.eq.s32.totalorder %s19, 0
      %p66 = por %p64, %p65
      %p67 = scmp.ne.s32.totalorder %s53, %s54
      %p68 = scmp.eq.s32.totalorder %s20, 1
      %p69 = por %p67, %p68
      %p71 = scmp.ne.s32.totalorder %s54, %s70
      %p72 = scmp.eq.s32.totalorder %s20, 0
      %p73 = por %p71, %p72
      %s75 = sadd.s32 %s74, 1
      %p78 = scmp.eq.s32.totalorder %s14, 1
      %p79 = scmp.ne.s32.totalorder %s74, %s76
      %p80 = scmp.eq.s32.totalorder %s14, 0
      %p81 = por %p79, %p80
      %p82 = scmp.ne.s32.totalorder %s74, %s76
      %p83 = scmp.eq.s32.totalorder %s19, 1
      %p84 = por %p82, %p83
      %p85 = scmp.ne.s32.totalorder %s76, %s77
      %p86 = scmp.eq.s32.totalorder %s19, 0
      %p87 = por %p85, %p86
      %p88 = scmp.ne.s32.totalorder %s76, %s77
      %p89 = scmp.eq.s32.totalorder %s20, 1
      %p90 = por %p88, %p89
      %p92 = scmp.ne.s32.totalorder %s77, %s91
      %p93 = scmp.eq.s32.totalorder %s20, 0
      %p94 = por %p92, %p93
      %s96 = sadd.s32 %s95, 1
      %p99 = scmp.eq.s32.totalorder %s14, 1
      %p100 = scmp.ne.s32.totalorder %s95, %s97
      %p101 = scmp.eq.s32.totalorder %s14, 0
      %p102 = por %p100, %p101
      %p103 = scmp.ne.s32.totalorder %s95, %s97
      %p104 = scmp.eq.s32.totalorder %s19, 1
      %p105 = por %p103, %p104
      %p106 = scmp.ne.s32.totalorder %s97, %s98
      %p107 = scmp.eq.s32.totalorder %s19, 0
      %p108 = por %p106, %p107
      %p109 = scmp.ne.s32.totalorder %s97, %s98
      %p110 = scmp.eq.s32.totalorder %s20, 1
      %p111 = por %p109, %p110
      %p113 = scmp.ne.s32.totalorder %s98, %s112
      %p114 = scmp.eq.s32.totalorder %s20, 0
      %p115 = por %p113, %p114
      %s117 = sadd.s32 %s116, 1
      %p120 = scmp.eq.s32.totalorder %s14, 1
      %p121 = scmp.ne.s32.totalorder %s116, %s118
      %p122 = scmp.eq.s32.totalorder %s14, 0
      %p123 = por %p121, %p122
      %p124 = scmp.ne.s32.totalorder %s116, %s118
      %p125 = scmp.eq.s32.totalorder %s19, 1
      %p126 = por %p124, %p125
      %p127 = scmp.ne.s32.totalorder %s118, %s119
      %p128 = scmp.eq.s32.totalorder %s19, 0
      %p129 = por %p127, %p128
      %p130 = scmp.ne.s32.totalorder %s118, %s119
      %p131 = scmp.eq.s32.totalorder %s20, 1
      %p132 = por %p130, %p131
      %p134 = scmp.ne.s32.totalorder %s119, %s133
      %p135 = scmp.eq.s32.totalorder %s20, 0
      %p136 = por %p134, %p135
      %s137 = ssub.s32 %s14, %s21
      %p138 = scmp.eq.s32.totalorder %s137, 0
      %s140 = sadd.s32 %s139, 1
      %s141 = scalar_select %p138, %s139, %s140
      %p144 = pneg %p138
      %p145 = scmp.eq.s32.totalorder %s14, 1
      %p146 = por %p144, %p145
      %p147 = scmp.ne.s32.totalorder %s139, %s142
      %p148 = scmp.eq.s32.totalorder %s14, 0
      %p149 = por %p147, %p148
      %p150 = scmp.ne.s32.totalorder %s139, %s142
      %p151 = scmp.eq.s32.totalorder %s19, 1
      %p152 = por %p150, %p151
      %p153 = scmp.ne.s32.totalorder %s142, %s143
      %p154 = scmp.eq.s32.totalorder %s19, 0
      %p155 = por %p153, %p154
      %p156 = scmp.ne.s32.totalorder %s142, %s143
      %p157 = scmp.eq.s32.totalorder %s20, 1
      %p158 = por %p156, %p157
      %p160 = scmp.ne.s32.totalorder %s143, %s159
      %p161 = scmp.eq.s32.totalorder %s20, 0
      %p162 = por %p160, %p161
      %p163 = scmp.le.s32.totalorder 1, %s14
      %p164 = scmp.lt.s32.totalorder %s14, 3
      %p165 = pnand %p163, %p164
      %p166 = pneg %p165
      // Predicated region
      $region9: #{tpu_custom_call.1} parent=5 // pred_check
        _
      $region10: #{tpu_custom_call.1} parent=5 // pred_check_branch
        %168 = sbr.rel (%p165) target = $region12
      $region11: #{tpu_custom_call.1} parent=5 // pred_region
        %s169 = ssub.s32 %s14, 1
        // Predicated region
        $region13: #{tpu_custom_call.1} parent=11 // pred_check
          %p170 = pneg %p87
        $region14: #{tpu_custom_call.1} parent=11 // pred_check_branch
          %172 = sbr.rel (%p170) target = $region16
        $region15: #{tpu_custom_call.1} parent=11 // pred_region
          _
        $region16: #{tpu_custom_call.1} parent=11 // pred_fallthru
          _
        // Predicated region
        $region17: #{tpu_custom_call.1} parent=11 // pred_check
          %p173 = pneg %p108
        $region18: #{tpu_custom_call.1} parent=11 // pred_check_branch
          %175 = sbr.rel (%p173) target = $region20
        $region19: #{tpu_custom_call.1} parent=11 // pred_region
          _
        $region20: #{tpu_custom_call.1} parent=11 // pred_fallthru
          _
        // Predicated region
        $region21: #{tpu_custom_call.1} parent=11 // pred_check
          %p176 = pneg %p129
        $region22: #{tpu_custom_call.1} parent=11 // pred_check_branch
          %178 = sbr.rel (%p176) target = $region24
        $region23: #{tpu_custom_call.1} parent=11 // pred_region
          _
        $region24: #{tpu_custom_call.1} parent=11 // pred_fallthru
          _
      $region12: #{tpu_custom_call.1} parent=5 // pred_fallthru
        _
      %p179 = scmp.lt.s32.totalorder %s14, 2
      // Predicated region
      $region25: #{tpu_custom_call.1} parent=5 // pred_check
        %p180 = pneg %p179
      $region26: #{tpu_custom_call.1} parent=5 // pred_check_branch
        %182 = sbr.rel (%p180) target = $region28
      $region27: #{tpu_custom_call.1} parent=5 // pred_region
        // Predicated region
        $region29: #{tpu_custom_call.1} parent=27 // pred_check
          %p183 = pneg %p34
        $region30: #{tpu_custom_call.1} parent=27 // pred_check_branch
          %185 = sbr.rel (%p183) target = $region32
        $region31: #{tpu_custom_call.1} parent=27 // pred_region
          %p186 = scmp.lt.s32.totalorder %s14, 1
          %s187 = scalar_select %p186, %s14, 1
          %s188 = smul.addr %s187, 8
          %s189 = smul.addr %s188, 4
          %s190 = scalar_lea.vmem %s0, %s189
        $region32: #{tpu_custom_call.1} parent=27 // pred_fallthru
          _
        // Predicated region
        $region33: #{tpu_custom_call.1} parent=27 // pred_check
          %p191 = pneg %p60
        $region34: #{tpu_custom_call.1} parent=27 // pred_check_branch
          %193 = sbr.rel (%p191) target = $region36
        $region35: #{tpu_custom_call.1} parent=27 // pred_region
          %p194 = scmp.lt.s32.totalorder %s14, 1
          %s195 = scalar_select %p194, %s14, 1
          %s196 = smul.addr %s195, 8
          %s197 = smul.addr %s196, 4
          %s198 = scalar_lea.vmem %s1, %s197
        $region36: #{tpu_custom_call.1} parent=27 // pred_fallthru
          _
      $region28: #{tpu_custom_call.1} parent=5 // pred_fallthru
        _
      %p199 = scmp.le.s32.totalorder 1, %s14
      %p200 = scmp.lt.s32.totalorder %s14, 3
      %p201 = pnand %p199, %p200
      %p202 = pneg %p201
      // Predicated region
      $region37: #{tpu_custom_call.1} parent=5 // pred_check
        _
      $region38: #{tpu_custom_call.1} parent=5 // pred_check_branch
        %204 = sbr.rel (%p201) target = $region40
      $region39: #{tpu_custom_call.1} parent=5 // pred_region
        %s205 = ssub.s32 %s14, 1
        %p206 = scmp.lt.s32.totalorder %s19, 1
        %s207 = scalar_select %p206, %s19, 1
        %s208 = smul.addr %s207, 8
        %s209 = smul.addr %s208, 4
        %s210 = scalar_lea.vmem %s0, %s209
        %p211 = pneg %p40
        %p212 = pneg %p37
        %p213 = scmp.lt.s32.totalorder %s19, 1
        %s214 = scalar_select %p213, %s19, 1
        %s215 = smul.addr %s214, 8
        %s216 = smul.addr %s215, 4
        %s217 = scalar_lea.vmem %s1, %s216
        %p218 = pneg %p66
        %p219 = pneg %p63
        %p220 = pneg %p87
        %p221 = pneg %p84
        %p222 = pneg %p108
        %p223 = pneg %p105
        %p224 = pneg %p129
        %p225 = pneg %p126
        %p226 = pneg %p155
        %p227 = pneg %p152
        %s228 = sand.u32 %s142, 1
        %s229 = scalar_lea.sflag [#allocation3], %s228
        %s230 = sand.u32 %s142, 1
        %s231 = smul.addr %s230, 64
        %s232 = scalar_lea.vmem [#allocation2], %s231
        %p233 = scmp.lt.s32.totalorder %s19, 1
        %s234 = scalar_select %p233, %s19, 1
        %s235 = smul.addr %s234, 8
        %s236 = smul.addr %s235, 4
        %s237 = scalar_lea.vmem %s0, %s236
        %p238 = scmp.lt.s32.totalorder %s19, 1
        %s239 = scalar_select %p238, %s19, 1
        %s240 = smul.addr %s239, 8
        %s241 = smul.addr %s240, 4
        %s242 = scalar_lea.vmem %s1, %s241
        %v244 = vld [vmem:[%s2] sm:$0xf]
        %v245 = vld [vmem:[%s2 + $0x4] sm:$0xf]
        %v246 = vld [vmem:[%s2 + $0x8] sm:$0xf]
        %v247 = vld [vmem:[%s2 + $0xc] sm:$0xf]
        %v248 = vld [vmem:[%s2 + $0x10] sm:$0xf]
        %v249 = vld [vmem:[%s2 + $0x14] sm:$0xf]
        %v250 = vld [vmem:[%s2 + $0x18] sm:$0xf]
        %v251 = vld [vmem:[%s2 + $0x1c] sm:$0xf]
        %v252 = vld [vmem:[%s2 + $0x20] sm:$0xf]
        %v253 = vld [vmem:[%s2 + $0x24] sm:$0xf]
        %v254 = vld [vmem:[%s2 + $0x28] sm:$0xf]
        %v255 = vld [vmem:[%s2 + $0x2c] sm:$0xf]
        %v256 = vld [vmem:[%s2 + $0x30] sm:$0xf]
        %v257 = vld [vmem:[%s2 + $0x34] sm:$0xf]
        %v258 = vld [vmem:[%s2 + $0x38] sm:$0xf]
        %v259 = vld [vmem:[%s2 + $0x3c] sm:$0xf]
        %v260 = vld [vmem:[%s3] sm:$0xff]
        %v261 = vld [vmem:[%s3 + $0x8] sm:$0xff]
        %v262 = vld [vmem:[%s3 + $0x10] sm:$0xff]
        %v263 = vld [vmem:[%s3 + $0x18] sm:$0xff]
        %v264 = vld [vmem:[%s3 + $0x20] sm:$0xff]
        %v265 = vld [vmem:[%s3 + $0x28] sm:$0xff]
        %v266 = vld [vmem:[%s3 + $0x30] sm:$0xff]
        %v267 = vld [vmem:[%s3 + $0x38] sm:$0xff]
        %v268 = vld [vmem:[%s3 + $0x40] sm:$0xff]
        %v269 = vld [vmem:[%s3 + $0x48] sm:$0xff]
        %v270 = vld [vmem:[%s3 + $0x50] sm:$0xff]
        %v271 = vld [vmem:[%s3 + $0x58] sm:$0xff]
        %v272 = vld [vmem:[%s3 + $0x60] sm:$0xff]
        %v273 = vld [vmem:[%s3 + $0x68] sm:$0xff]
        %v274 = vld [vmem:[%s3 + $0x70] sm:$0xff]
        %v275 = vld [vmem:[%s3 + $0x78] sm:$0xff]
        %v276 = vld [vmem:[%s242] sm:$0xff]
        %v277 = vld [vmem:[%s242 + $0x8] sm:$0xff]
        %v278 = vld [vmem:[%s242 + $0x10] sm:$0xff]
        %v279 = vld [vmem:[%s242 + $0x18] sm:$0xff]
        %v280 = vld [vmem:[%s237] sm:$0xff]
        %v281 = vld [vmem:[%s237 + $0x8] sm:$0xff]
        %v282 = vld [vmem:[%s237 + $0x10] sm:$0xff]
        %v283 = vld [vmem:[%s237 + $0x18] sm:$0xff]
        %285 = vset.pattern.permute.xlu0 0
        %286 = vperm.xlu0 %285, %v260
        %v287 = vpop.permute.xlu0 %286
        %290 = vset.pattern.permute.xlu0 0
        %291 = vperm.xlu0 %290, %v261
        %v292 = vpop.permute.xlu0 %291
        %295 = vset.pattern.permute.xlu0 0
        %296 = vperm.xlu0 %295, %v262
        %v297 = vpop.permute.xlu0 %296
        %300 = vset.pattern.permute.xlu0 0
        %301 = vperm.xlu0 %300, %v263
        %v302 = vpop.permute.xlu0 %301
        %v308 = vunpack.c.l.b16 %v244
        %v309 = vunpack.c.l.b16 %v245
        %v310 = vunpack.c.l.b16 %v246
        %v311 = vunpack.c.l.b16 %v247
        %v312 = vpack.c.b16 %v309, %v308
        %v313 = vpack.c.b16 %v311, %v310
        %v318 = vunpack.c.l.b16 %v280
        %v319 = vunpack.c.h.b16 %v280
        %v320 = vunpack.c.l.b16 %v281
        %v321 = vunpack.c.h.b16 %v281
        %v322 = vunpack.c.l.b16 %v282
        %v323 = vunpack.c.h.b16 %v282
        %v324 = vunpack.c.l.b16 %v283
        %v325 = vunpack.c.h.b16 %v283
        %v326 = vpack.c.b16 %v320, %v318
        %v327 = vpack.c.b16 %v321, %v319
        %v328 = vpack.c.b16 %v324, %v322
        %v329 = vpack.c.b16 %v325, %v323
        %vm334 = vcmask 261120
        %v336 = vsel %vm334, %v312, 0
        %v339 = vsel %vm334, %v313, 0
        %341 = vmatprep.subr.bf16.mxu0 0
        %342 = vmatpush1.bf16.msra.mxu0 0
        %343 = vmatprep.subr.bf16.mxu0 0
        %344 = vmatpush1.bf16.msra.mxu0 0
        %345 = vmatprep.subr.bf16.mxu0 0
        %346 = vmatpush1.bf16.msra.mxu0 0
        %347 = vmatprep.subr.bf16.mxu0 0
        %348 = vmatpush1.bf16.msra.mxu0 0
        %349 = vmatprep.subr.bf16.mxu0 0
        %350 = vmatpush1.bf16.msra.mxu0 0
        %351 = vmatprep.subr.bf16.mxu0 0
        %352 = vmatpush1.bf16.msra.mxu0 0
        %353 = vmatprep.subr.bf16.mxu0 %v329
        %354 = vmatpush1.bf16.msra.mxu0 %v328
        %355 = vmatprep.subr.bf16.mxu0 %v327
        %356 = vmatpush1.bf16.msra.mxu0 %v326
        %357 = vmatprep.subr.bf16.mxu0 0
        %358 = vmatpush2.bf16.msra.mxu0 0
        %359 = vmatprep.subr.bf16.mxu0 0
        %360 = vmatpush2.bf16.msra.mxu0 0
        %361 = vmatprep.subr.bf16.mxu0 0
        %362 = vmatpush2.bf16.msra.mxu0 0
        %363 = vmatprep.subr.bf16.mxu0 0
        %364 = vmatpush2.bf16.msra.mxu0 0
        %365 = vmatprep.subr.bf16.mxu0 0
        %366 = vmatpush2.bf16.msra.mxu0 0
        %367 = vmatprep.subr.bf16.mxu0 0
        %368 = vmatpush2.bf16.msra.mxu0 0
        %369 = vmatprep.subr.bf16.mxu0 0
        %370 = vmatpush2.bf16.msra.mxu0 0
        %371 = vmatprep.subr.bf16.mxu0 0
        %372 = vmatpush2.bf16.msra.mxu0 0
        %373 = vmatprep.mubr.bf16.mxu0 0
        %374 = vmatmul.mubr.bf16.gmra.mxu0 %v336
        %v375 = vpop.f32.mrf.mxu0
        %v376 = vadd.f32 %v287, %v375
        %v377 = vpop.f32.mrf.mxu0
        %v378 = vadd.f32 %v287, %v377
        %v379 = vpop.f32.mrf.mxu0
        %v380 = vadd.f32 %v292, %v379
        %v381 = vpop.f32.mrf.mxu0
        %v382 = vadd.f32 %v292, %v381
        %383 = vmatprep.mubr.bf16.mxu0 0
        %384 = vmatmul.mubr.bf16.gmra.mxu0 %v339
        %v385 = vpop.f32.mrf.mxu0
        %v386 = vadd.f32 %v297, %v385
        %v387 = vpop.f32.mrf.mxu0
        %v388 = vadd.f32 %v297, %v387
        %v389 = vpop.f32.mrf.mxu0
        %v390 = vadd.f32 %v302, %v389
        %v391 = vpop.f32.mrf.mxu0
        %v392 = vadd.f32 %v302, %v391
        %393 = vdwg.mxu0
        %395 = vset.pattern.permute.xlu0 0
        %396 = vperm.xlu0 %395, %v264
        %v397 = vpop.permute.xlu0 %396
        %400 = vset.pattern.permute.xlu0 0
        %401 = vperm.xlu0 %400, %v265
        %v402 = vpop.permute.xlu0 %401
        %405 = vset.pattern.permute.xlu0 0
        %406 = vperm.xlu0 %405, %v266
        %v407 = vpop.permute.xlu0 %406
        %410 = vset.pattern.permute.xlu0 0
        %411 = vperm.xlu0 %410, %v267
        %v412 = vpop.permute.xlu0 %411
        %v418 = vunpack.c.l.b16 %v248
        %v419 = vunpack.c.l.b16 %v249
        %v420 = vunpack.c.l.b16 %v250
        %v421 = vunpack.c.l.b16 %v251
        %v422 = vpack.c.b16 %v419, %v418
        %v423 = vpack.c.b16 %v421, %v420
        %v428 = vunpack.c.l.b16 %v276
        %v429 = vunpack.c.h.b16 %v276
        %v430 = vunpack.c.l.b16 %v277
        %v431 = vunpack.c.h.b16 %v277
        %v432 = vunpack.c.l.b16 %v278
        %v433 = vunpack.c.h.b16 %v278
        %v434 = vunpack.c.l.b16 %v279
        %v435 = vunpack.c.h.b16 %v279
        %v436 = vpack.c.b16 %v430, %v428
        %v437 = vpack.c.b16 %v431, %v429
        %v438 = vpack.c.b16 %v434, %v432
        %v439 = vpack.c.b16 %v435, %v433
        %v445 = vsel %vm334, %v422, 0
        %v448 = vsel %vm334, %v423, 0
        %450 = vmatprep.subr.bf16.mxu0 0
        %451 = vmatpush1.bf16.msra.mxu0 0
        %452 = vmatprep.subr.bf16.mxu0 0
        %453 = vmatpush1.bf16.msra.mxu0 0
        %454 = vmatprep.subr.bf16.mxu0 0
        %455 = vmatpush1.bf16.msra.mxu0 0
        %456 = vmatprep.subr.bf16.mxu0 0
        %457 = vmatpush1.bf16.msra.mxu0 0
        %458 = vmatprep.subr.bf16.mxu0 0
        %459 = vmatpush1.bf16.msra.mxu0 0
        %460 = vmatprep.subr.bf16.mxu0 0
        %461 = vmatpush1.bf16.msra.mxu0 0
        %462 = vmatprep.subr.bf16.mxu0 %v439
        %463 = vmatpush1.bf16.msra.mxu0 %v438
        %464 = vmatprep.subr.bf16.mxu0 %v437
        %465 = vmatpush1.bf16.msra.mxu0 %v436
        %466 = vmatprep.subr.bf16.mxu0 0
        %467 = vmatpush2.bf16.msra.mxu0 0
        %468 = vmatprep.subr.bf16.mxu0 0
        %469 = vmatpush2.bf16.msra.mxu0 0
        %470 = vmatprep.subr.bf16.mxu0 0
        %471 = vmatpush2.bf16.msra.mxu0 0
        %472 = vmatprep.subr.bf16.mxu0 0
        %473 = vmatpush2.bf16.msra.mxu0 0
        %474 = vmatprep.subr.bf16.mxu0 0
        %475 = vmatpush2.bf16.msra.mxu0 0
        %476 = vmatprep.subr.bf16.mxu0 0
        %477 = vmatpush2.bf16.msra.mxu0 0
        %478 = vmatprep.subr.bf16.mxu0 0
        %479 = vmatpush2.bf16.msra.mxu0 0
        %480 = vmatprep.subr.bf16.mxu0 0
        %481 = vmatpush2.bf16.msra.mxu0 0
        %482 = vmatprep.mubr.bf16.mxu0 0
        %483 = vmatmul.mubr.bf16.gmra.mxu0 %v445
        %v484 = vpop.f32.mrf.mxu0
        %v485 = vadd.f32 %v397, %v484
        %v486 = vpop.f32.mrf.mxu0
        %v487 = vadd.f32 %v397, %v486
        %v488 = vpop.f32.mrf.mxu0
        %v489 = vadd.f32 %v402, %v488
        %v490 = vpop.f32.mrf.mxu0
        %v491 = vadd.f32 %v402, %v490
        %492 = vmatprep.mubr.bf16.mxu0 0
        %493 = vmatmul.mubr.bf16.gmra.mxu0 %v448
        %v494 = vpop.f32.mrf.mxu0
        %v495 = vadd.f32 %v407, %v494
        %v496 = vpop.f32.mrf.mxu0
        %v497 = vadd.f32 %v407, %v496
        %v498 = vpop.f32.mrf.mxu0
        %v499 = vadd.f32 %v412, %v498
        %v500 = vpop.f32.mrf.mxu0
        %v501 = vadd.f32 %v412, %v500
        %502 = vdwg.mxu0
        %v503 = vpack.c.bf16 %v380, %v376
        %v504 = vpack.c.bf16 %v382, %v378
        %v505 = vpack.c.bf16 %v390, %v386
        %v506 = vpack.c.bf16 %v392, %v388
        %v507 = vpack.c.bf16 %v489, %v485
        %v508 = vpack.c.bf16 %v491, %v487
        %v509 = vpack.c.bf16 %v499, %v495
        %v510 = vpack.c.bf16 %v501, %v497
        %511 = vmatprep.subr.bf16.mxu0 0
        %512 = vmatpush1.bf16.xpose.msra.mxu0 0
        %513 = vmatprep.subr.bf16.mxu0 0
        %514 = vmatpush1.bf16.xpose.msra.mxu0 0
        %515 = vmatprep.subr.bf16.mxu0 0
        %516 = vmatpush1.bf16.xpose.msra.mxu0 0
        %517 = vmatprep.subr.bf16.mxu0 0
        %518 = vmatpush1.bf16.xpose.msra.mxu0 0
        %519 = vmatprep.subr.bf16.mxu0 0
        %520 = vmatpush1.bf16.xpose.msra.mxu0 0
        %521 = vmatprep.subr.bf16.mxu0 0
        %522 = vmatpush1.bf16.xpose.msra.mxu0 0
        %523 = vmatprep.subr.bf16.mxu0 %v510
        %524 = vmatpush1.bf16.xpose.msra.mxu0 %v509
        %525 = vmatprep.subr.bf16.mxu0 %v508
        %526 = vmatpush1.bf16.xpose.msra.mxu0 %v507
        %527 = vmatprep.subr.bf16.mxu0 0
        %528 = vmatpush2.bf16.xpose.msra.mxu0 0
        %529 = vmatprep.subr.bf16.mxu0 0
        %530 = vmatpush2.bf16.xpose.msra.mxu0 0
        %531 = vmatprep.subr.bf16.mxu0 0
        %532 = vmatpush2.bf16.xpose.msra.mxu0 0
        %533 = vmatprep.subr.bf16.mxu0 0
        %534 = vmatpush2.bf16.xpose.msra.mxu0 0
        %535 = vmatprep.subr.bf16.mxu0 0
        %536 = vmatpush2.bf16.xpose.msra.mxu0 0
        %537 = vmatprep.subr.bf16.mxu0 0
        %538 = vmatpush2.bf16.xpose.msra.mxu0 0
        %539 = vmatprep.subr.bf16.mxu0 0
        %540 = vmatpush2.bf16.xpose.msra.mxu0 0
        %541 = vmatprep.subr.bf16.mxu0 0
        %542 = vmatpush2.bf16.xpose.msra.mxu0 0
        %543 = vmatprep.mubr.bf16.mxu0 %v504
        %544 = vmatmul.mubr.bf16.gmra.mxu0 %v503
        %v545 = vpop.f32.mrf.mxu0
        %v546 = vadd.f32 0.0, %v545
        %v547 = vpop.f32.mrf.mxu0
        %v548 = vpop.f32.mrf.mxu0
        %v549 = vadd.f32 0.0, %v548
        %v550 = vpop.f32.mrf.mxu0
        %551 = vmatprep.mubr.bf16.mxu0 %v506
        %552 = vmatmul.mubr.bf16.gmra.mxu0 %v505
        %v553 = vpop.f32.mrf.mxu0
        %v554 = vadd.f32 0.0, %v553
        %v555 = vpop.f32.mrf.mxu0
        %v556 = vpop.f32.mrf.mxu0
        %v557 = vadd.f32 0.0, %v556
        %v558 = vpop.f32.mrf.mxu0
        %559 = vdwg.mxu0
        %v560 = vmul.f32 %v376, %v376
        %v561 = vmul.f32 %v378, %v378
        %v562 = vmul.f32 %v380, %v380
        %v563 = vmul.f32 %v382, %v382
        %v564 = vmul.f32 %v386, %v386
        %v565 = vmul.f32 %v388, %v388
        %v566 = vmul.f32 %v390, %v390
        %v567 = vmul.f32 %v392, %v392
        %v568 = vadd.f32 %v560, %v561
        %569 = vadd.xlane.f32.xlu0 %v568
        %v570 = vpop.xlane.xlu0 %569
        %v571 = vadd.f32 %v562, %v563
        %572 = vadd.xlane.f32.xlu0 %v571
        %v573 = vpop.xlane.xlu0 %572
        %v574 = vadd.f32 %v564, %v565
        %575 = vadd.xlane.f32.xlu0 %v574
        %v576 = vpop.xlane.xlu0 %575
        %v577 = vadd.f32 %v566, %v567
        %578 = vadd.xlane.f32.xlu0 %v577
        %v579 = vpop.xlane.xlu0 %578
        %v580 = vmul.f32 %v485, %v485
        %v581 = vmul.f32 %v487, %v487
        %v582 = vmul.f32 %v489, %v489
        %v583 = vmul.f32 %v491, %v491
        %v584 = vmul.f32 %v495, %v495
        %v585 = vmul.f32 %v497, %v497
        %v586 = vmul.f32 %v499, %v499
        %v587 = vmul.f32 %v501, %v501
        %v588 = vadd.f32 %v580, %v581
        %589 = vadd.xlane.f32.xlu0 %v588
        %v590 = vpop.xlane.xlu0 %589
        %v591 = vadd.f32 %v582, %v583
        %592 = vadd.xlane.f32.xlu0 %v591
        %v593 = vpop.xlane.xlu0 %592
        %v594 = vadd.f32 %v584, %v585
        %595 = vadd.xlane.f32.xlu0 %v594
        %v596 = vpop.xlane.xlu0 %595
        %v597 = vadd.f32 %v586, %v587
        %598 = vadd.xlane.f32.xlu0 %v597
        %v599 = vpop.xlane.xlu0 %598
        %v600 = vld [vmem:[%s4] sm:$0xff]
        %v601 = vld [vmem:[%s4 + $0x8] sm:$0xff]
        %v602 = vld [vmem:[%s4 + $0x10] sm:$0xff]
        %v603 = vld [vmem:[%s4 + $0x18] sm:$0xff]
        %v604 = vmax.f32 %v570, 1e-24
        %v605 = vmax.f32 %v573, 1e-24
        %v606 = vmax.f32 %v576, 1e-24
        %v607 = vmax.f32 %v579, 1e-24
        %v608 = vrsqrt.pop %v604
        %v609 = vrsqrt.pop %v605
        %v610 = vrsqrt.pop %v606
        %v611 = vrsqrt.pop %v607
        %v612 = vmax.f32 %v590, 1e-24
        %v613 = vmax.f32 %v593, 1e-24
        %v614 = vmax.f32 %v596, 1e-24
        %v615 = vmax.f32 %v599, 1e-24
        %v616 = vrsqrt.pop %v612
        %v617 = vrsqrt.pop %v613
        %v618 = vrsqrt.pop %v614
        %v619 = vrsqrt.pop %v615
        %v620 = vlaneseq
        %v621 = vshrl.u32 %v620, 7
        %v622 = vadd.s32 %v621, 8
        %v623 = vadd.s32 %v621, 16
        %v624 = vadd.s32 %v621, 24
        %v625 = vlaneseq
        %v626 = vand.u32 %v625, 127
        %vm627 = vcmp.eq.s32.totalorder %v621, %v626
        %vm628 = vcmp.eq.s32.totalorder %v622, %v626
        %vm629 = vcmp.eq.s32.totalorder %v623, %v626
        %vm630 = vcmp.eq.s32.totalorder %v624, %v626
        %v631 = vsel %vm627, %v616, 0.0
        %v632 = vsel %vm628, %v617, 0.0
        %v633 = vsel %vm629, %v618, 0.0
        %v634 = vsel %vm630, %v619, 0.0
        %v635 = vsel %vm334, %v631, 0.0
        %v636 = vsel %vm334, %v632, 0.0
        %v637 = vadd.f32 %v635, %v636
        %v638 = vsel %vm334, %v633, 0.0
        %v639 = vadd.f32 %v637, %v638
        %v640 = vsel %vm334, %v634, 0.0
        %v641 = vadd.f32 %v639, %v640
        %v642 = vrot.slane %v641, 4
        %v643 = vadd.f32 %v641, %v642
        %v644 = vrot.slane %v643, 2
        %v645 = vadd.f32 %v643, %v644
        %v646 = vrot.slane %v645, 1
        %v647 = vadd.f32 %v645, %v646
        %v648 = vmul.f32 %v608, %v600
        %v649 = vmul.f32 %v609, %v601
        %v650 = vmul.f32 %v610, %v602
        %v651 = vmul.f32 %v611, %v603
        %653 = vset.pattern.permute.xlu0 0
        %654 = vperm.xlu0 %653, %v648
        %v655 = vpop.permute.xlu0 %654
        %658 = vset.pattern.permute.xlu0 0
        %659 = vperm.xlu0 %658, %v649
        %v660 = vpop.permute.xlu0 %659
        %663 = vset.pattern.permute.xlu0 0
        %664 = vperm.xlu0 %663, %v650
        %v665 = vpop.permute.xlu0 %664
        %668 = vset.pattern.permute.xlu0 0
        %669 = vperm.xlu0 %668, %v651
        %v670 = vpop.permute.xlu0 %669
        %v672 = vmul.f32 %v546, %v655
        %v673 = vmul.f32 %v549, %v660
        %v674 = vmul.f32 %v554, %v665
        %v675 = vmul.f32 %v557, %v670
        %v676 = vmul.f32 %v672, %v647
        %v677 = vmul.f32 %v673, %v647
        %v678 = vmul.f32 %v674, %v647
        %v679 = vmul.f32 %v675, %v647
        %681 = vset.pattern.permute.xlu0 1
        %682 = vperm.xlu0 %681, %v600
        %v683 = vpop.permute.xlu0 %682
        %686 = vset.pattern.permute.xlu0 1
        %687 = vperm.xlu0 %686, %v601
        %v688 = vpop.permute.xlu0 %687
        %691 = vset.pattern.permute.xlu0 1
        %692 = vperm.xlu0 %691, %v602
        %v693 = vpop.permute.xlu0 %692
        %696 = vset.pattern.permute.xlu0 1
        %697 = vperm.xlu0 %696, %v603
        %v698 = vpop.permute.xlu0 %697
        %v700 = vsel %vm627, %v683, 0.0
        %v701 = vsel %vm628, %v688, 0.0
        %v702 = vsel %vm629, %v693, 0.0
        %v703 = vsel %vm630, %v698, 0.0
        %v704 = vsel %vm334, %v700, 0.0
        %v705 = vsel %vm334, %v701, 0.0
        %v706 = vadd.f32 %v704, %v705
        %v707 = vsel %vm334, %v702, 0.0
        %v708 = vadd.f32 %v706, %v707
        %v709 = vsel %vm334, %v703, 0.0
        %v710 = vadd.f32 %v708, %v709
        %v711 = vrot.slane %v710, 4
        %v712 = vadd.f32 %v710, %v711
        %v713 = vrot.slane %v712, 2
        %v714 = vadd.f32 %v712, %v713
        %v715 = vrot.slane %v714, 1
        %v716 = vadd.f32 %v714, %v715
        %vm717 = vcmp.eq.f32.partialorder %v683, %v716
        %vm718 = vcmp.eq.f32.partialorder %v688, %v716
        %vm719 = vcmp.eq.f32.partialorder %v693, %v716
        %vm720 = vcmp.eq.f32.partialorder %v698, %v716
        %v721 = vsel %vm717, %v676, -1e+30
        %v722 = vsel %vm718, %v677, -1e+30
        %v723 = vsel %vm719, %v678, -1e+30
        %v724 = vsel %vm720, %v679, -1e+30
        %v725 = vsel %vm334, %v721, -inf
        %726 = vmax.xlane.f32.xlu0 %v725
        %v727 = vpop.xlane.xlu0 %726
        %v728 = vsel %vm334, %v722, -inf
        %729 = vmax.xlane.f32.xlu0 %v728
        %v730 = vpop.xlane.xlu0 %729
        %v731 = vsel %vm334, %v723, -inf
        %732 = vmax.xlane.f32.xlu0 %v731
        %v733 = vpop.xlane.xlu0 %732
        %v734 = vsel %vm334, %v724, -inf
        %735 = vmax.xlane.f32.xlu0 %v734
        %v736 = vpop.xlane.xlu0 %735
        %v737 = vsub.f32 %v721, %v727
        %v738 = vsub.f32 %v722, %v730
        %v739 = vsub.f32 %v723, %v733
        %v740 = vsub.f32 %v724, %v736
        %v741 = vmul.f32 %v737, 1.442695
        %v742 = vpow.pop %v741
        %v743 = vmul.f32 %v738, 1.442695
        %v744 = vpow.pop %v743
        %v745 = vmul.f32 %v739, 1.442695
        %v746 = vpow.pop %v745
        %v747 = vmul.f32 %v740, 1.442695
        %v748 = vpow.pop %v747
        %v749 = vsel %vm334, %v742, 0.0
        %750 = vadd.xlane.f32.xlu0 %v749
        %v751 = vpop.xlane.xlu0 %750
        %v752 = vsel %vm334, %v744, 0.0
        %753 = vadd.xlane.f32.xlu0 %v752
        %v754 = vpop.xlane.xlu0 %753
        %v755 = vsel %vm334, %v746, 0.0
        %756 = vadd.xlane.f32.xlu0 %v755
        %v757 = vpop.xlane.xlu0 %756
        %v758 = vsel %vm334, %v748, 0.0
        %759 = vadd.xlane.f32.xlu0 %v758
        %v760 = vpop.xlane.xlu0 %759
        %v761 = vrcp.pop %v751
        %v762 = vrcp.pop %v754
        %v763 = vrcp.pop %v757
        %v764 = vrcp.pop %v760
        %v765 = vmul.f32 %v742, %v761
        %v766 = vmul.f32 %v744, %v762
        %v767 = vmul.f32 %v746, %v763
        %v768 = vmul.f32 %v748, %v764
        %v769 = vpack.c.bf16 %v766, %v765
        %v770 = vpack.c.bf16 %v768, %v767
        %v775 = vunpack.c.l.b16 %v256
        %v776 = vunpack.c.l.b16 %v257
        %v777 = vunpack.c.l.b16 %v258
        %v778 = vunpack.c.l.b16 %v259
        %v779 = vpack.c.b16 %v776, %v775
        %v780 = vpack.c.b16 %v778, %v777
        %v782 = vsel %vm334, %v779, 0
        %v785 = vsel %vm334, %v780, 0
        %787 = vmatprep.subr.bf16.mxu0 0
        %788 = vmatpush1.bf16.msra.mxu0 0
        %789 = vmatprep.subr.bf16.mxu0 0
        %790 = vmatpush1.bf16.msra.mxu0 0
        %791 = vmatprep.subr.bf16.mxu0 0
        %792 = vmatpush1.bf16.msra.mxu0 0
        %793 = vmatprep.subr.bf16.mxu0 0
        %794 = vmatpush1.bf16.msra.mxu0 0
        %795 = vmatprep.subr.bf16.mxu0 0
        %796 = vmatpush1.bf16.msra.mxu0 0
        %797 = vmatprep.subr.bf16.mxu0 0
        %798 = vmatpush1.bf16.msra.mxu0 0
        %799 = vmatprep.subr.bf16.mxu0 0
        %800 = vmatpush1.bf16.msra.mxu0 %v770
        %801 = vmatprep.subr.bf16.mxu0 0
        %802 = vmatpush1.bf16.msra.mxu0 %v769
        %803 = vmatprep.subr.bf16.mxu0 0
        %804 = vmatpush2.bf16.msra.mxu0 0
        %805 = vmatprep.subr.bf16.mxu0 0
        %806 = vmatpush2.bf16.msra.mxu0 0
        %807 = vmatprep.subr.bf16.mxu0 0
        %808 = vmatpush2.bf16.msra.mxu0 0
        %809 = vmatprep.subr.bf16.mxu0 0
        %810 = vmatpush2.bf16.msra.mxu0 0
        %811 = vmatprep.subr.bf16.mxu0 0
        %812 = vmatpush2.bf16.msra.mxu0 0
        %813 = vmatprep.subr.bf16.mxu0 0
        %814 = vmatpush2.bf16.msra.mxu0 0
        %815 = vmatprep.subr.bf16.mxu0 0
        %816 = vmatpush2.bf16.msra.mxu0 0
        %817 = vmatprep.subr.bf16.mxu0 0
        %818 = vmatpush2.bf16.msra.mxu0 0
        %819 = vmatprep.mubr.bf16.mxu0 0
        %820 = vmatmul.mubr.bf16.gmra.mxu0 %v782
        %v821 = vpop.f32.mrf.mxu0
        %v822 = vadd.f32 0.0, %v821
        %v823 = vpop.f32.mrf.mxu0
        %v824 = vpop.f32.mrf.mxu0
        %v825 = vadd.f32 0.0, %v824
        %v826 = vpop.f32.mrf.mxu0
        %827 = vmatprep.mubr.bf16.mxu0 0
        %828 = vmatmul.mubr.bf16.gmra.mxu0 %v785
        %v829 = vpop.f32.mrf.mxu0
        %v830 = vadd.f32 0.0, %v829
        %v831 = vpop.f32.mrf.mxu0
        %v832 = vpop.f32.mrf.mxu0
        %v833 = vadd.f32 0.0, %v832
        %v834 = vpop.f32.mrf.mxu0
        %835 = vdwg.mxu0
        %v836 = vpack.c.bf16 %v825, %v822
        %v837 = vpack.c.bf16 %v833, %v830
        %v842 = vunpack.c.l.b16 %v252
        %v843 = vunpack.c.l.b16 %v253
        %v844 = vunpack.c.l.b16 %v254
        %v845 = vunpack.c.l.b16 %v255
        %v846 = vpack.c.b16 %v843, %v842
        %v847 = vpack.c.b16 %v845, %v844
        %v851 = vsel %vm334, %v836, 0
        %v854 = vsel %vm334, %v837, 0
        %856 = vmatprep.subr.bf16.mxu0 0
        %857 = vmatpush1.bf16.msra.mxu0 0
        %858 = vmatprep.subr.bf16.mxu0 0
        %859 = vmatpush1.bf16.msra.mxu0 0
        %860 = vmatprep.subr.bf16.mxu0 0
        %861 = vmatpush1.bf16.msra.mxu0 0
        %862 = vmatprep.subr.bf16.mxu0 0
        %863 = vmatpush1.bf16.msra.mxu0 0
        %864 = vmatprep.subr.bf16.mxu0 0
        %865 = vmatpush1.bf16.msra.mxu0 0
        %866 = vmatprep.subr.bf16.mxu0 0
        %867 = vmatpush1.bf16.msra.mxu0 0
        %868 = vmatprep.subr.bf16.mxu0 0
        %869 = vmatpush1.bf16.msra.mxu0 %v847
        %870 = vmatprep.subr.bf16.mxu0 0
        %871 = vmatpush1.bf16.msra.mxu0 %v846
        %872 = vmatprep.subr.bf16.mxu0 0
        %873 = vmatpush2.bf16.msra.mxu0 0
        %874 = vmatprep.subr.bf16.mxu0 0
        %875 = vmatpush2.bf16.msra.mxu0 0
        %876 = vmatprep.subr.bf16.mxu0 0
        %877 = vmatpush2.bf16.msra.mxu0 0
        %878 = vmatprep.subr.bf16.mxu0 0
        %879 = vmatpush2.bf16.msra.mxu0 0
        %880 = vmatprep.subr.bf16.mxu0 0
        %881 = vmatpush2.bf16.msra.mxu0 0
        %882 = vmatprep.subr.bf16.mxu0 0
        %883 = vmatpush2.bf16.msra.mxu0 0
        %884 = vmatprep.subr.bf16.mxu0 0
        %885 = vmatpush2.bf16.msra.mxu0 0
        %886 = vmatprep.subr.bf16.mxu0 0
        %887 = vmatpush2.bf16.msra.mxu0 0
        %888 = vmatprep.mubr.bf16.mxu0 0
        %889 = vmatmul.mubr.bf16.gmra.mxu0 %v851
        %v890 = vpop.f32.mrf.mxu0
        %v891 = vadd.f32 0.0, %v890
        %v892 = vpop.f32.mrf.mxu0
        %v893 = vpop.f32.mrf.mxu0
        %v894 = vadd.f32 0.0, %v893
        %v895 = vpop.f32.mrf.mxu0
        %896 = vmatprep.mubr.bf16.mxu0 0
        %897 = vmatmul.mubr.bf16.gmra.mxu0 %v854
        %v898 = vpop.f32.mrf.mxu0
        %v899 = vadd.f32 0.0, %v898
        %v900 = vpop.f32.mrf.mxu0
        %v901 = vpop.f32.mrf.mxu0
        %v902 = vadd.f32 0.0, %v901
        %v903 = vpop.f32.mrf.mxu0
        %904 = vdwg.mxu0
        %v906 = vsel %vm334, %v822, 0
        %v909 = vsel %vm334, %v825, 0
        %v912 = vsel %vm334, %v830, 0
        %v915 = vsel %vm334, %v833, 0
        %917 = vmatprep.subr.mxu0 0.0
        %918 = vmatpush1.msra.mxu0 0.0
        %919 = vmatprep.subr.mxu0 0.0
        %920 = vmatpush1.msra.mxu0 0.0
        %921 = vmatprep.subr.mxu0 0.0
        %922 = vmatpush1.msra.mxu0 0.0
        %923 = vmatprep.subr.mxu0 0.0
        %924 = vmatpush1.msra.mxu0 0.0
        %925 = vmatprep.subr.mxu0 0.0
        %926 = vmatpush1.msra.mxu0 0.0
        %927 = vmatprep.subr.mxu0 0.0
        %928 = vmatpush1.msra.mxu0 0.0
        %929 = vmatprep.subr.mxu0 0.0
        %930 = vmatpush1.msra.mxu0 0.0
        %931 = vmatprep.subr.mxu0 0.0
        %932 = vmatpush1.msra.mxu0 0.0
        %933 = vmatprep.subr.mxu0 0.0
        %934 = vmatpush1.msra.mxu0 0.0
        %935 = vmatprep.subr.mxu0 0.0
        %936 = vmatpush1.msra.mxu0 0.0
        %937 = vmatprep.subr.mxu0 0.0
        %938 = vmatpush1.msra.mxu0 0.0
        %939 = vmatprep.subr.mxu0 0.0
        %940 = vmatpush1.msra.mxu0 0.0
        %941 = vmatprep.subr.mxu0 0.0
        %942 = vmatpush1.msra.mxu0 %v271
        %943 = vmatprep.subr.mxu0 0.0
        %944 = vmatpush1.msra.mxu0 %v270
        %945 = vmatprep.subr.mxu0 0.0
        %946 = vmatpush1.msra.mxu0 %v269
        %947 = vmatprep.subr.mxu0 0.0
        %948 = vmatpush1.msra.mxu0 %v268
        %949 = vmatprep.subr.mxu0 0.0
        %950 = vmatpush2.msra.mxu0 0.0
        %951 = vmatprep.subr.mxu0 0.0
        %952 = vmatpush2.msra.mxu0 0.0
        %953 = vmatprep.subr.mxu0 0.0
        %954 = vmatpush2.msra.mxu0 0.0
        %955 = vmatprep.subr.mxu0 0.0
        %956 = vmatpush2.msra.mxu0 0.0
        %957 = vmatprep.subr.mxu0 0.0
        %958 = vmatpush2.msra.mxu0 0.0
        %959 = vmatprep.subr.mxu0 0.0
        %960 = vmatpush2.msra.mxu0 0.0
        %961 = vmatprep.subr.mxu0 0.0
        %962 = vmatpush2.msra.mxu0 0.0
        %963 = vmatprep.subr.mxu0 0.0
        %964 = vmatpush2.msra.mxu0 0.0
        %965 = vmatprep.subr.mxu0 0.0
        %966 = vmatpush2.msra.mxu0 0.0
        %967 = vmatprep.subr.mxu0 0.0
        %968 = vmatpush2.msra.mxu0 0.0
        %969 = vmatprep.subr.mxu0 0.0
        %970 = vmatpush2.msra.mxu0 0.0
        %971 = vmatprep.subr.mxu0 0.0
        %972 = vmatpush2.msra.mxu0 0.0
        %973 = vmatprep.subr.mxu0 0.0
        %974 = vmatpush2.msra.mxu0 0.0
        %975 = vmatprep.subr.mxu0 0.0
        %976 = vmatpush2.msra.mxu0 0.0
        %977 = vmatprep.subr.mxu0 0.0
        %978 = vmatpush2.msra.mxu0 0.0
        %979 = vmatprep.subr.mxu0 0.0
        %980 = vmatpush2.msra.mxu0 0.0
        %981 = vmatprep.mubr.f32.mxu0 0.0
        %982 = vmatmul.mubr.f32.gmra.mxu0 %v906
        %v983 = vpop.f32.mrf.mxu0
        %v984 = vadd.f32 %v272, %v983
        %v985 = vpop.f32.mrf.mxu0
        %986 = vmatprep.mubr.f32.mxu0 0.0
        %987 = vmatmul.mubr.f32.gmra.mxu0 %v909
        %v988 = vpop.f32.mrf.mxu0
        %v989 = vadd.f32 %v273, %v988
        %v990 = vpop.f32.mrf.mxu0
        %991 = vmatprep.mubr.f32.mxu0 0.0
        %992 = vmatmul.mubr.f32.gmra.mxu0 %v912
        %v993 = vpop.f32.mrf.mxu0
        %v994 = vadd.f32 %v274, %v993
        %v995 = vpop.f32.mrf.mxu0
        %996 = vmatprep.mubr.f32.mxu0 0.0
        %997 = vmatmul.mubr.f32.gmra.mxu0 %v915
        %v998 = vpop.f32.mrf.mxu0
        %v999 = vadd.f32 %v275, %v998
        %v1000 = vpop.f32.mrf.mxu0
        %1001 = vdwg.mxu0
        %v1002 = vpack.c.bf16 %v894, %v891
        %v1003 = vpack.c.bf16 %v902, %v899
        %1005 = vset.pattern.permute.xlu0 0
        %1006 = vperm.xlu0 %1005, %v984
        %v1007 = vpop.permute.xlu0 %1006
        %1010 = vset.pattern.permute.xlu0 0
        %1011 = vperm.xlu0 %1010, %v989
        %v1012 = vpop.permute.xlu0 %1011
        %1015 = vset.pattern.permute.xlu0 0
        %1016 = vperm.xlu0 %1015, %v994
        %v1017 = vpop.permute.xlu0 %1016
        %1020 = vset.pattern.permute.xlu0 0
        %1021 = vperm.xlu0 %1020, %v999
        %v1022 = vpop.permute.xlu0 %1021
        %v1025 = vsel %vm334, %v1002, 0
        %v1028 = vsel %vm334, %v1003, 0
        %1030 = vmatprep.subr.bf16.mxu0 0
        %1031 = vmatpush1.bf16.msra.mxu0 0
        %1032 = vmatprep.subr.bf16.mxu0 0
        %1033 = vmatpush1.bf16.msra.mxu0 0
        %1034 = vmatprep.subr.bf16.mxu0 0
        %1035 = vmatpush1.bf16.msra.mxu0 0
        %1036 = vmatprep.subr.bf16.mxu0 0
        %1037 = vmatpush1.bf16.msra.mxu0 0
        %1038 = vmatprep.subr.bf16.mxu0 0
        %1039 = vmatpush1.bf16.msra.mxu0 0
        %1040 = vmatprep.subr.bf16.mxu0 0
        %1041 = vmatpush1.bf16.msra.mxu0 0
        %1042 = vmatprep.subr.bf16.mxu0 %v439
        %1043 = vmatpush1.bf16.msra.mxu0 %v438
        %1044 = vmatprep.subr.bf16.mxu0 %v437
        %1045 = vmatpush1.bf16.msra.mxu0 %v436
        %1046 = vmatprep.subr.bf16.mxu0 0
        %1047 = vmatpush2.bf16.msra.mxu0 0
        %1048 = vmatprep.subr.bf16.mxu0 0
        %1049 = vmatpush2.bf16.msra.mxu0 0
        %1050 = vmatprep.subr.bf16.mxu0 0
        %1051 = vmatpush2.bf16.msra.mxu0 0
        %1052 = vmatprep.subr.bf16.mxu0 0
        %1053 = vmatpush2.bf16.msra.mxu0 0
        %1054 = vmatprep.subr.bf16.mxu0 0
        %1055 = vmatpush2.bf16.msra.mxu0 0
        %1056 = vmatprep.subr.bf16.mxu0 0
        %1057 = vmatpush2.bf16.msra.mxu0 0
        %1058 = vmatprep.subr.bf16.mxu0 0
        %1059 = vmatpush2.bf16.msra.mxu0 0
        %1060 = vmatprep.subr.bf16.mxu0 0
        %1061 = vmatpush2.bf16.msra.mxu0 0
        %1062 = vmatprep.mubr.bf16.mxu0 0
        %1063 = vmatmul.mubr.bf16.gmra.mxu0 %v1025
        %v1064 = vpop.f32.mrf.mxu0
        %v1065 = vadd.f32 %v1007, %v1064
        %v1066 = vpop.f32.mrf.mxu0
        %v1067 = vadd.f32 %v1007, %v1066
        %v1068 = vpop.f32.mrf.mxu0
        %v1069 = vadd.f32 %v1012, %v1068
        %v1070 = vpop.f32.mrf.mxu0
        %v1071 = vadd.f32 %v1012, %v1070
        %1072 = vmatprep.mubr.bf16.mxu0 0
        %1073 = vmatmul.mubr.bf16.gmra.mxu0 %v1028
        %v1074 = vpop.f32.mrf.mxu0
        %v1075 = vadd.f32 %v1017, %v1074
        %v1076 = vpop.f32.mrf.mxu0
        %v1077 = vadd.f32 %v1017, %v1076
        %v1078 = vpop.f32.mrf.mxu0
        %v1079 = vadd.f32 %v1022, %v1078
        %v1080 = vpop.f32.mrf.mxu0
        %v1081 = vadd.f32 %v1022, %v1080
        %1082 = vdwg.mxu0
        %1083 = vst [vmem:[%s232] sm:$0xff] %v1065
        %1084 = vst [vmem:[%s232 + $0x8] sm:$0xff] %v1067
        %1085 = vst [vmem:[%s232 + $0x10] sm:$0xff] %v1069
        %1086 = vst [vmem:[%s232 + $0x18] sm:$0xff] %v1071
        %1087 = vst [vmem:[%s232 + $0x20] sm:$0xff] %v1075
        %1088 = vst [vmem:[%s232 + $0x28] sm:$0xff] %v1077
        %1089 = vst [vmem:[%s232 + $0x30] sm:$0xff] %v1079
        %1090 = vst [vmem:[%s232 + $0x38] sm:$0xff] %v1081
        %s1091 = sand.u32 %s142, 1
        %s1092 = scalar_lea.sflag [#allocation3], %s1091
        %s1093 = sand.u32 %s142, 1
        %s1094 = smul.addr %s1093, 64
        %s1095 = scalar_lea.vmem [#allocation2], %s1094
        // Predicated region
        $region41: #{tpu_custom_call.1} parent=39 // pred_check
          %p1096 = pneg %p152
        $region42: #{tpu_custom_call.1} parent=39 // pred_check_branch
          %1098 = sbr.rel (%p1096) target = $region44
        $region43: #{tpu_custom_call.1} parent=39 // pred_region
          %s1100 = ssub.s32 1024, 1024
          %1101 = vsyncadd %s1092, %s1100
          %s1102 = smul.addr %s19, 8
          %s1103 = smul.addr %s1102, 128
          %s1104 = scalar_lea.hbm %s5, %s1103
          %s1105 = sshll.u32 %s1095, 4
          %s1106 = int_to_ptr.vmem [resolvable:$true] %s1105
          %1111 = dma.vmem_to_hbm [thread:$0]  %s1106, 1024, %s1104, %s1092, 256, 256, 16
        $region44: #{tpu_custom_call.1} parent=39 // pred_fallthru
          _
      $region40: #{tpu_custom_call.1} parent=5 // pred_fallthru
        _
      %p1112 = scmp.le.s32.totalorder 2, %s14
      // Predicated region
      $region45: #{tpu_custom_call.1} parent=5 // pred_check
        %p1113 = pneg %p1112
      $region46: #{tpu_custom_call.1} parent=5 // pred_check_branch
        %1115 = sbr.rel (%p1113) target = $region48
      $region47: #{tpu_custom_call.1} parent=5 // pred_region
        %s1116 = ssub.s32 %s14, 2
        // Predicated region
        $region49: #{tpu_custom_call.1} parent=47 // pred_check
          %p1117 = pneg %p158
        $region50: #{tpu_custom_call.1} parent=47 // pred_check_branch
          %1119 = sbr.rel (%p1117) target = $region52
        $region51: #{tpu_custom_call.1} parent=47 // pred_region
          %s1120 = sand.u32 %s143, 1
          %s1121 = scalar_lea.sflag [#allocation3], %s1120
          %s1122 = sand.u32 %s143, 1
          %s1123 = smul.addr %s1122, 64
          %s1124 = scalar_lea.vmem [#allocation2], %s1123
          %1125 = dma.done %s1121, 1024
        $region52: #{tpu_custom_call.1} parent=47 // pred_fallthru
          _
      $region48: #{tpu_custom_call.1} parent=5 // pred_fallthru
        _
    $region6: #{tpu_custom_call.1} parent=1 // loop_footer
      %s18 = sadd.s32 1, %s14
    $region7: #{tpu_custom_call.1} parent=1 // loop_footer_branch
      %13 = sbr.rel target = $region3
    $region8: #{tpu_custom_call.1} parent=1 // loop_exit
      _
    %1126 = vsyncpa [#allocation3], 1
    %s1127 = scalar_lea.sflag [#allocation3], 1
    %1128 = vsyncpa %s1127, 1

</llo_original>
